<compile_context>
chip_gen: v7x
topology: tpu7x:2x2x1
jax: 0.10.0
libtpu: 0.0.40
codegen_flags: <defaults>
</compile_context>

<pallas_src>
import jax
import jax.numpy as jnp
from jax.experimental import pallas as pl
from jax.experimental.pallas import tpu as pltpu

LN_EPS = 1e-5  # PyTorch nn.LayerNorm default


def actor_kernel(obs_ref, w1_ref, w2_ref, w3_ref, rows_ref, mu_ref):
    F = w1_ref.shape[1]          # feature_dim
    H = w2_ref.shape[1]          # hidden_dim
    A = w3_ref.shape[1]          # action_dim (unpadded)
    cdt = w1_ref.dtype           # MXU input dtype (bf16 by default, f32 optional)

    # packed small parameter rows (static slices of a single fused input)
    b1   = rows_ref[0:1, :F]
    g    = rows_ref[1:2, :F]
    beta = rows_ref[2:3, :F]
    b2   = rows_ref[3:4, :H]
    b3   = rows_ref[4:5, :A]

    x = obs_ref[...]

    # trunk: Linear -> LayerNorm -> Tanh   (f32 accumulate + f32 elementwise)
    h = jnp.dot(x.astype(cdt), w1_ref[...], preferred_element_type=jnp.float32) + b1
    mean = jnp.mean(h, axis=-1, keepdims=True)
    d = h - mean
    var = jnp.mean(d * d, axis=-1, keepdims=True)      # mean-centered variance
    h = d * jax.lax.rsqrt(var + LN_EPS)
    h = jnp.tanh(h * g + beta)

    # policy: Linear -> ReLU -> Linear, then tanh squash
    p = jnp.dot(h.astype(cdt), w2_ref[...], preferred_element_type=jnp.float32) + b2
    p = jnp.maximum(p, 0.0)
    mu = jnp.dot(p.astype(cdt), w3_ref[...], preferred_element_type=jnp.float32) + b3
    mu_ref[...] = jnp.tanh(mu).astype(mu_ref.dtype)


def _pick_batch_tile(B, max_tile=2048, min_split=256):
    """Batch-tile size.

    Small batches run as a single block (splitting only adds per-step overhead).
    Larger batches split into an EVEN number of >=8-row-aligned tiles (capped at
    ~max_tile rows) so the 'parallel' grid axis shards across v7x's two
    TensorCores and the ~0.35 us per-grid-step overhead is amortized.  Per-tile
    VMEM at 2048 rows is well under 1 MB, far from any generation's limit.
    """
    if B < min_split:
        return B
    n_tiles = max(2, -(-B // max_tile))   # ceil
    if n_tiles % 2:
        n_tiles += 1                       # even grid -> balanced 2-TC split on v7x
    tb = -(-B // n_tiles)                  # ceil
    tb = -(-tb // 8) * 8                   # sublane-aligned
    return tb


def prepare_actor_params(params, compute_dtype=jnp.bfloat16):
    """Per-parameter-update layout prep (hoisted out of the per-call path).

    Packs the five (1, dim) vectors (b1, ln_g, ln_b, b2, b3) into a single
    (5, P) f32 row block (one DMA descriptor instead of five padded tiles) and
    casts the weight matrices to the MXU compute dtype.  Call this once when
    parameters are created/updated, then reuse the result for every forward.
    """
    F = params["w1"].shape[1]
    H = params["w2"].shape[1]
    A = params["w3"].shape[1]
    P = max(F, H, A)
    rows = jnp.zeros((5, P), jnp.float32)
    rows = rows.at[0, :F].set(params["b1"].reshape(F))
    rows = rows.at[1, :F].set(params["ln_g"].reshape(F))
    rows = rows.at[2, :F].set(params["ln_b"].reshape(F))
    rows = rows.at[3, :H].set(params["b2"].reshape(H))
    rows = rows.at[4, :A].set(params["b3"].reshape(A))
    return {
        "w1": params["w1"].astype(compute_dtype),
        "w2": params["w2"].astype(compute_dtype),
        "w3": params["w3"].astype(compute_dtype),
        "rows": rows,
    }


def actor_forward(obs, prep, std):
    """obs: (B, obs_dim) f32; prep: prepare_actor_params(...) output; std: scalar.

    Returns (mu, std) each (B, action_dim) f32.
    """
    B, obs_dim = obs.shape
    F = prep["w1"].shape[1]
    H = prep["w2"].shape[1]
    A = prep["w3"].shape[1]
    P = prep["rows"].shape[1]

    TB = _pick_batch_tile(B)
    grid = (pl.cdiv(B, TB),)
    const = lambda i: (0, 0)     # weights/rows stay VMEM-resident across grid steps

    mu = pl.pallas_call(
        actor_kernel,
        out_shape=jax.ShapeDtypeStruct((B, A), jnp.float32),
        grid=grid,
        in_specs=[
            pl.BlockSpec((TB, obs_dim), lambda i: (i, 0)),
            pl.BlockSpec((obs_dim, F), const),
            pl.BlockSpec((F, H), const),
            pl.BlockSpec((H, A), const),
            pl.BlockSpec((5, P), const),
        ],
        out_specs=pl.BlockSpec((TB, A), lambda i: (i, 0)),
        compiler_params=pltpu.CompilerParams(dimension_semantics=("parallel",)),
    )(obs, prep["w1"], prep["w2"], prep["w3"], prep["rows"])

    # std carries no information: build it in the wrapper (XLA fuses/const-folds it).
    std_out = jnp.full((B, A), std, dtype=jnp.float32)
    # TODO(synk): utils.TruncatedNormal (sampling / log_prob / clamp) has no Pallas
    # equivalent; the caller applies the distribution to (mu, std_out).
    return mu, std_out


def init_params(key, obs_dim, feature_dim, hidden_dim, action_dim):
    ks = jax.random.split(key, 6)
    scale = 0.1
    return {
        "w1": scale * jax.random.normal(ks[0], (obs_dim, feature_dim), jnp.float32),
        "b1": scale * jax.random.normal(ks[1], (1, feature_dim), jnp.float32),
        "ln_g": jnp.ones((1, feature_dim), jnp.float32),
        "ln_b": jnp.zeros((1, feature_dim), jnp.float32),
        "w2": scale * jax.random.normal(ks[2], (feature_dim, hidden_dim), jnp.float32),
        "b2": scale * jax.random.normal(ks[3], (1, hidden_dim), jnp.float32),
        "w3": scale * jax.random.normal(ks[4], (hidden_dim, action_dim), jnp.float32),
        "b3": scale * jax.random.normal(ks[5], (1, action_dim), jnp.float32),
    }


def actor_forward_ref(obs, params, std):
    h = obs @ params["w1"] + params["b1"]
    mean = jnp.mean(h, axis=-1, keepdims=True)
    var = jnp.mean((h - mean) ** 2, axis=-1, keepdims=True)
    h = (h - mean) / jnp.sqrt(var + LN_EPS)
    h = jnp.tanh(h * params["ln_g"] + params["ln_b"])
    p = jnp.maximum(h @ params["w2"] + params["b2"], 0.0)
    mu = jnp.tanh(p @ params["w3"] + params["b3"])
    return mu, jnp.ones_like(mu) * std


if __name__ == "__main__":
    # obs_type='states' => feature_dim = hidden_dim
    batch, obs_dim, hidden_dim, action_dim = 8, 24, 32, 6
    feature_dim = hidden_dim

    key = jax.random.PRNGKey(0)
    k_obs, k_par = jax.random.split(key)
    obs = jax.random.normal(k_obs, (batch, obs_dim), jnp.float32)
    params = init_params(k_par, obs_dim, feature_dim, hidden_dim, action_dim)
    std = 0.2

    mu_ref, std_ref = actor_forward_ref(obs, params, std)

    # f32 MXU path: tight numerical match against the pure-JAX reference.
    prep_f32 = prepare_actor_params(params, compute_dtype=jnp.float32)
    mu32, std_out = actor_forward(obs, prep_f32, std)
    jax.block_until_ready((mu32, std_out))
    assert mu32.shape == (batch, action_dim) and std_out.shape == (batch, action_dim)
    assert jnp.allclose(mu32, mu_ref, atol=1e-5, rtol=1e-5)
    assert jnp.allclose(std_out, std_ref, atol=1e-6)

    # Default bf16-weight MXU path (perf): bf16 rounding of the tiny matmuls
    # bounds the mu error well below 1e-2 at these scales.
    prep_bf16 = prepare_actor_params(params)
    mu_bf, _ = actor_forward(obs, prep_bf16, std)
    jax.block_until_ready(mu_bf)
    assert jnp.allclose(mu_bf, mu_ref, atol=2e-2, rtol=2e-2)

    print("KERNEL_OK")
</pallas_src>

<mosaic_0001>
module attributes {stable_mosaic.version = 11 : i64} {
  func.func @actor_kernel(%arg0: i32, %arg1: memref<8x24xf32, #tpu.memory_space<vmem>>, %arg2: memref<24x32xf32, #tpu.memory_space<vmem>>, %arg3: memref<32x32xf32, #tpu.memory_space<vmem>>, %arg4: memref<32x6xf32, #tpu.memory_space<vmem>>, %arg5: memref<5x32xf32, #tpu.memory_space<vmem>>, %arg6: memref<8x6xf32, #tpu.memory_space<vmem>>) attributes {dimension_semantics = [#tpu.dimension_semantics<parallel>], iteration_bounds = array<i64: 1>, scalar_prefetch = 0 : i64, scratch_operands = 0 : i64, tpu.core_type = #tpu.core_type<tc>, window_params = [{transform_indices = @transform_0, window_bounds = array<i64: 8, 24>}, {pipeline_mode = #tpu.pipeline_mode<synchronous>, transform_indices = @transform_1, window_bounds = array<i64: 24, 32>}, {pipeline_mode = #tpu.pipeline_mode<synchronous>, transform_indices = @transform_2, window_bounds = array<i64: 32, 32>}, {pipeline_mode = #tpu.pipeline_mode<synchronous>, transform_indices = @transform_3, window_bounds = array<i64: 32, 6>}, {pipeline_mode = #tpu.pipeline_mode<synchronous>, transform_indices = @transform_4, window_bounds = array<i64: 5, 32>}, {transform_indices = @transform_5, window_bounds = array<i64: 8, 6>}]} {
    %c0 = arith.constant 0 : index
    %c0_0 = arith.constant 0 : index
    %0 = vector.load %arg5[%c0, %c0_0] : memref<5x32xf32, #tpu.memory_space<vmem>>, vector<1x32xf32>
    %c1 = arith.constant 1 : index
    %c0_1 = arith.constant 0 : index
    %1 = vector.load %arg5[%c1, %c0_1] : memref<5x32xf32, #tpu.memory_space<vmem>>, vector<1x32xf32>
    %c2 = arith.constant 2 : index
    %c0_2 = arith.constant 0 : index
    %2 = vector.load %arg5[%c2, %c0_2] : memref<5x32xf32, #tpu.memory_space<vmem>>, vector<1x32xf32>
    %c3 = arith.constant 3 : index
    %c0_3 = arith.constant 0 : index
    %3 = vector.load %arg5[%c3, %c0_3] : memref<5x32xf32, #tpu.memory_space<vmem>>, vector<1x32xf32>
    %c4 = arith.constant 4 : index
    %c0_4 = arith.constant 0 : index
    %4 = vector.load %arg5[%c4, %c0_4] : memref<5x32xf32, #tpu.memory_space<vmem>>, vector<1x6xf32>
    %c0_5 = arith.constant 0 : index
    %c0_6 = arith.constant 0 : index
    %5 = vector.load %arg1[%c0_5, %c0_6] : memref<8x24xf32, #tpu.memory_space<vmem>>, vector<8x24xf32>
    %c0_7 = arith.constant 0 : index
    %c0_8 = arith.constant 0 : index
    %6 = vector.load %arg2[%c0_7, %c0_8] : memref<24x32xf32, #tpu.memory_space<vmem>>, vector<24x32xf32>
    %cst = arith.constant dense<0.000000e+00> : vector<8x32xf32>
    %7 = tpu.matmul %5, %6, %cst {dimension_numbers = #tpu.dot_dimension_numbers<[1], [0], [0], [1], [0, 0, 1, 1], [], []>} : vector<8x24xf32>, vector<24x32xf32>, vector<8x32xf32> -> vector<8x32xf32>
    %8 = vector.broadcast %0 : vector<1x32xf32> to vector<8x32xf32>
    %9 = arith.addf %7, %8 : vector<8x32xf32>
    %cst_9 = arith.constant dense<0.000000e+00> : vector<8xf32>
    %10 = vector.multi_reduction <add>, %9, %cst_9 [1] : vector<8x32xf32> to vector<8xf32>
    %11 = vector.shape_cast %10 : vector<8xf32> to vector<8x1xf32>
    %cst_10 = arith.constant 3.200000e+01 : f32
    %12 = vector.broadcast %cst_10 : f32 to vector<8x1xf32>
    %13 = arith.divf %11, %12 : vector<8x1xf32>
    %14 = vector.broadcast %13 : vector<8x1xf32> to vector<8x32xf32>
    %15 = arith.subf %9, %14 : vector<8x32xf32>
    %16 = arith.mulf %15, %15 : vector<8x32xf32>
    %cst_11 = arith.constant dense<0.000000e+00> : vector<8xf32>
    %17 = vector.multi_reduction <add>, %16, %cst_11 [1] : vector<8x32xf32> to vector<8xf32>
    %18 = vector.shape_cast %17 : vector<8xf32> to vector<8x1xf32>
    %cst_12 = arith.constant 3.200000e+01 : f32
    %19 = vector.broadcast %cst_12 : f32 to vector<8x1xf32>
    %20 = arith.divf %18, %19 : vector<8x1xf32>
    %cst_13 = arith.constant 9.99999974E-6 : f32
    %21 = vector.broadcast %cst_13 : f32 to vector<8x1xf32>
    %22 = arith.addf %20, %21 : vector<8x1xf32>
    %23 = math.rsqrt %22 : vector<8x1xf32>
    %24 = vector.broadcast %23 : vector<8x1xf32> to vector<8x32xf32>
    %25 = arith.mulf %15, %24 : vector<8x32xf32>
    %26 = vector.broadcast %1 : vector<1x32xf32> to vector<8x32xf32>
    %27 = arith.mulf %25, %26 : vector<8x32xf32>
    %28 = vector.broadcast %2 : vector<1x32xf32> to vector<8x32xf32>
    %29 = arith.addf %27, %28 : vector<8x32xf32>
    %30 = math.tanh %29 : vector<8x32xf32>
    %c0_14 = arith.constant 0 : index
    %c0_15 = arith.constant 0 : index
    %31 = vector.load %arg3[%c0_14, %c0_15] : memref<32x32xf32, #tpu.memory_space<vmem>>, vector<32x32xf32>
    %cst_16 = arith.constant dense<0.000000e+00> : vector<8x32xf32>
    %32 = tpu.matmul %30, %31, %cst_16 {dimension_numbers = #tpu.dot_dimension_numbers<[1], [0], [0], [1], [0, 0, 1, 1], [], []>} : vector<8x32xf32>, vector<32x32xf32>, vector<8x32xf32> -> vector<8x32xf32>
    %33 = vector.broadcast %3 : vector<1x32xf32> to vector<8x32xf32>
    %34 = arith.addf %32, %33 : vector<8x32xf32>
    %cst_17 = arith.constant 0.000000e+00 : f32
    %35 = vector.broadcast %cst_17 : f32 to vector<8x32xf32>
    %36 = arith.maximumf %34, %35 : vector<8x32xf32>
    %c0_18 = arith.constant 0 : index
    %c0_19 = arith.constant 0 : index
    %37 = vector.load %arg4[%c0_18, %c0_19] : memref<32x6xf32, #tpu.memory_space<vmem>>, vector<32x6xf32>
    %cst_20 = arith.constant dense<0.000000e+00> : vector<8x6xf32>
    %38 = tpu.matmul %36, %37, %cst_20 {dimension_numbers = #tpu.dot_dimension_numbers<[1], [0], [0], [1], [0, 0, 1, 1], [], []>} : vector<8x32xf32>, vector<32x6xf32>, vector<8x6xf32> -> vector<8x6xf32>
    %39 = vector.broadcast %4 : vector<1x6xf32> to vector<8x6xf32>
    %40 = arith.addf %38, %39 : vector<8x6xf32>
    %41 = math.tanh %40 : vector<8x6xf32>
    %c0_21 = arith.constant 0 : index
    %c0_22 = arith.constant 0 : index
    %42 = vector.load %arg6[%c0_21, %c0_22] : memref<8x6xf32, #tpu.memory_space<vmem>>, vector<8x6xf32>
    tpu.vector_store %arg6[%c0_21, %c0_22], %41 {strides = array<i32>} : memref<8x6xf32, #tpu.memory_space<vmem>>, vector<8x6xf32>,
    return
  }
  func.func @transform_0(%arg0: i32) -> (i32, i32) {
    %c0_i32 = arith.constant 0 : i32
    %c0_i32_0 = arith.constant 0 : i32
    return %arg0, %c0_i32 : i32, i32
  }
  func.func @transform_1(%arg0: i32) -> (i32, i32) {
    %c0_i32 = arith.constant 0 : i32
    %c0_i32_0 = arith.constant 0 : i32
    %c0_i32_1 = arith.constant 0 : i32
    return %c0_i32, %c0_i32_0 : i32, i32
  }
  func.func @transform_2(%arg0: i32) -> (i32, i32) {
    %c0_i32 = arith.constant 0 : i32
    %c0_i32_0 = arith.constant 0 : i32
    %c0_i32_1 = arith.constant 0 : i32
    return %c0_i32, %c0_i32_0 : i32, i32
  }
  func.func @transform_3(%arg0: i32) -> (i32, i32) {
    %c0_i32 = arith.constant 0 : i32
    %c0_i32_0 = arith.constant 0 : i32
    %c0_i32_1 = arith.constant 0 : i32
    return %c0_i32, %c0_i32_0 : i32, i32
  }
  func.func @transform_4(%arg0: i32) -> (i32, i32) {
    %c0_i32 = arith.constant 0 : i32
    %c0_i32_0 = arith.constant 0 : i32
    %c0_i32_1 = arith.constant 0 : i32
    return %c0_i32, %c0_i32_0 : i32, i32
  }
  func.func @transform_5(%arg0: i32) -> (i32, i32) {
    %c0_i32 = arith.constant 0 : i32
    %c0_i32_0 = arith.constant 0 : i32
    return %arg0, %c0_i32 : i32, i32
  }
}

</mosaic_0001>

<llo_original>
// kernel: tpu_custom_call.1
$region0: #{tpu_custom_call.1}
  #allocation0 [shape = 'u32[]', space=smem, size = 0x4, offset = 0x4, fixed_abs, tag = 'smem constant byte address 0x4 - core index']
  #allocation1 [shape = 'u32[144,128]{1,0:T(1,128)}', space=vmem, size = 0x12000, scoped, tag = 'internal scratch']
  %s0 = inlined_call_operand.vmem [shape: f32[8,24], index: 0, kind: input, shape index: {}]
  %s1 = inlined_call_operand.hbm [shape: f32[24,32], index: 1, kind: input, shape index: {}]
  %s2 = inlined_call_operand.vmem [shape: f32[32,32], index: 2, kind: input, shape index: {}]
  %s3 = inlined_call_operand.vmem [shape: f32[32,6], index: 3, kind: input, shape index: {}]
  %s4 = inlined_call_operand.vmem [shape: f32[5,32], index: 4, kind: input, shape index: {}]
  %s5 = inlined_call_operand.hbm [shape: f32[8,6], index: 5, kind: output, shape index: {}]
  %s6 = sld [smem:[#allocation0]]
  $region34: #{tpu_custom_call.1} parent=0
    _
  %s8 = ssub.s32 1, %s6
  %s9 = scalar_select 0, %s8, %s6
  $region1: #{tpu_custom_call.1} parent=0
    #allocation2 [shape = 'u8[12288]{0}', space=vmem, size = 0x3000, scoped, tag = 'input window, operand 1, single buffered']
    #allocation3 [shape = 's32[1]{0}', space=sflag, size = 0x4, scoped, tag = 'scoped memory for tpu_custom_call.1']
    #allocation4 [shape = 's32[1]{0}', space=sflag, size = 0x4, scoped, tag = 'scoped memory for tpu_custom_call.1']
    #allocation5 [shape = 'u8[4096]{0}', space=vmem, size = 0x1000, scoped, tag = 'output window, operand 0, single buffered']
    %10 = vsyncpa [#allocation3], 0
    %11 = vsyncpa [#allocation4], 0
    // Predicated region
    $region2: #{tpu_custom_call.1} parent=1 // pred_check
      _
    $region3: #{tpu_custom_call.1} parent=1 // pred_check_branch
      %13 = sbr.rel (0) target = $region5
    $region4: #{tpu_custom_call.1} parent=1 // pred_region
      _
    $region5: #{tpu_custom_call.1} parent=1 // pred_fallthru
      _
    // Predicated region
    $region6: #{tpu_custom_call.1} parent=1 // pred_check
      _
    $region7: #{tpu_custom_call.1} parent=1 // pred_check_branch
      %15 = sbr.rel (0) target = $region9
    $region8: #{tpu_custom_call.1} parent=1 // pred_region
      %s17 = ssub.s32 384, 384
      %18 = vsyncadd [#allocation3], %s17
      %s19 = sshll.u32 [#allocation2], 4
      %s20 = int_to_ptr.vmem [resolvable:$true] %s19
      %25 = dma.hbm_to_vmem [thread:$0]  %s1, 384, %s20, [#allocation3], 128, 128, 8
    $region9: #{tpu_custom_call.1} parent=1 // pred_fallthru
      _
    // Predicated region
    $region10: #{tpu_custom_call.1} parent=1 // pred_check
      _
    $region11: #{tpu_custom_call.1} parent=1 // pred_check_branch
      %27 = sbr.rel (0) target = $region13
    $region12: #{tpu_custom_call.1} parent=1 // pred_region
      _
    $region13: #{tpu_custom_call.1} parent=1 // pred_fallthru
      _
    // Predicated region
    $region14: #{tpu_custom_call.1} parent=1 // pred_check
      _
    $region15: #{tpu_custom_call.1} parent=1 // pred_check_branch
      %29 = sbr.rel (0) target = $region17
    $region16: #{tpu_custom_call.1} parent=1 // pred_region
      _
    $region17: #{tpu_custom_call.1} parent=1 // pred_fallthru
      _
    // Predicated region
    $region18: #{tpu_custom_call.1} parent=1 // pred_check
      _
    $region19: #{tpu_custom_call.1} parent=1 // pred_check_branch
      %31 = sbr.rel (0) target = $region21
    $region20: #{tpu_custom_call.1} parent=1 // pred_region
      _
    $region21: #{tpu_custom_call.1} parent=1 // pred_fallthru
      _
    // Predicated region
    $region22: #{tpu_custom_call.1} parent=1 // pred_check
      _
    $region23: #{tpu_custom_call.1} parent=1 // pred_check_branch
      %33 = sbr.rel (0) target = $region25
    $region24: #{tpu_custom_call.1} parent=1 // pred_region
      %34 = dma.done [#allocation3], 384
    $region25: #{tpu_custom_call.1} parent=1 // pred_fallthru
      _
    %v35 = vld [vmem:[%s4] sm:$0x1]
    %v36 = vld [vmem:[%s4 + $0x1] sm:$0x1]
    %v37 = vld [vmem:[%s4 + $0x2] sm:$0x1]
    %v38 = vld [vmem:[%s4 + $0x3] sm:$0x1]
    %v39 = vld [vmem:[%s4 + $0x4] sm:$0x1]
    %v40 = vld [vmem:[%s0] sm:$0xff]
    %v41 = vld [vmem:[#allocation2] sm:$0xff]
    %v42 = vld [vmem:[#allocation2 + $0x8] sm:$0xff]
    %v43 = vld [vmem:[#allocation2 + $0x10] sm:$0xff]
    %v44 = vlaneseq
    %v45 = vshrl.u32 %v44, 7
    %v46 = vsub.s32 0, %v45
    %v47 = vrot.slane %v35, %v46
    %vm48 = vcmask 195584
    %v50 = vsel %vm48, %v40, 0
    %52 = vmatprep.subr.mxu0 0.0
    %53 = vmatpush1.msra.mxu0 %v41
    %54 = vmatprep.subr.mxu0 0.0
    %55 = vmatpush1.msra.mxu0 %v42
    %56 = vmatprep.subr.mxu0 0.0
    %57 = vmatpush1.msra.mxu0 %v43
    %58 = vmatprep.subr.mxu0 0.0
    %59 = vmatpush1.msra.mxu0 0.0
    %60 = vmatprep.subr.mxu0 0.0
    %61 = vmatpush1.msra.mxu0 0.0
    %62 = vmatprep.subr.mxu0 0.0
    %63 = vmatpush1.msra.mxu0 0.0
    %64 = vmatprep.subr.mxu0 0.0
    %65 = vmatpush1.msra.mxu0 0.0
    %66 = vmatprep.subr.mxu0 0.0
    %67 = vmatpush1.msra.mxu0 0.0
    %68 = vmatprep.subr.mxu0 0.0
    %69 = vmatpush1.msra.mxu0 0.0
    %70 = vmatprep.subr.mxu0 0.0
    %71 = vmatpush1.msra.mxu0 0.0
    %72 = vmatprep.subr.mxu0 0.0
    %73 = vmatpush1.msra.mxu0 0.0
    %74 = vmatprep.subr.mxu0 0.0
    %75 = vmatpush1.msra.mxu0 0.0
    %76 = vmatprep.subr.mxu0 0.0
    %77 = vmatpush1.msra.mxu0 0.0
    %78 = vmatprep.subr.mxu0 0.0
    %79 = vmatpush1.msra.mxu0 0.0
    %80 = vmatprep.subr.mxu0 0.0
    %81 = vmatpush1.msra.mxu0 0.0
    %82 = vmatprep.subr.mxu0 0.0
    %83 = vmatpush1.msra.mxu0 0.0
    %84 = vmatprep.subr.mxu0 0.0
    %85 = vmatpush1.msra.mxu0 0.0
    %86 = vmatprep.subr.mxu0 0.0
    %87 = vmatpush1.msra.mxu0 0.0
    %88 = vmatprep.subr.mxu0 0.0
    %89 = vmatpush1.msra.mxu0 0.0
    %90 = vmatprep.subr.mxu0 0.0
    %91 = vmatpush1.msra.mxu0 0.0
    %92 = vmatprep.subr.mxu0 0.0
    %93 = vmatpush1.msra.mxu0 0.0
    %94 = vmatprep.subr.mxu0 0.0
    %95 = vmatpush1.msra.mxu0 0.0
    %96 = vmatprep.subr.mxu0 0.0
    %97 = vmatpush1.msra.mxu0 0.0
    %98 = vmatprep.subr.mxu0 0.0
    %99 = vmatpush1.msra.mxu0 0.0
    %100 = vmatprep.subr.mxu0 0.0
    %101 = vmatpush1.msra.mxu0 0.0
    %102 = vmatprep.subr.mxu0 0.0
    %103 = vmatpush1.msra.mxu0 0.0
    %104 = vmatprep.subr.mxu0 0.0
    %105 = vmatpush1.msra.mxu0 0.0
    %106 = vmatprep.subr.mxu0 0.0
    %107 = vmatpush1.msra.mxu0 0.0
    %108 = vmatprep.subr.mxu0 0.0
    %109 = vmatpush1.msra.mxu0 0.0
    %110 = vmatprep.subr.mxu0 0.0
    %111 = vmatpush1.msra.mxu0 0.0
    %112 = vmatprep.subr.mxu0 0.0
    %113 = vmatpush1.msra.mxu0 0.0
    %114 = vmatprep.subr.mxu0 0.0
    %115 = vmatpush1.msra.mxu0 0.0
    %116 = vmatprep.mubr.f32.mxu0 0.0
    %117 = vmatmul.mubr.f32.gmra.mrb[0].mxu0 %v50
    %v118 = vpop.f32.mrb[0].mxu0
    %v119 = vadd.f32 %v47, %v118
    %v120 = vpop.f32.mrb[0].mxu0
    %121 = vdwg.mxu0
    %vm122 = vcmask 261120
    %v123 = vsel %vm122, %v119, 0.0
    %124 = vadd.xlane.f32.xlu0 %v123
    %v125 = vpop.xlane.xlu0 %124
    %v126 = vrcp.pop 32.0
    %v127 = vmul.f32 %v125, %v126
    %v128 = vsub.f32 %v119, %v127
    %v129 = vmul.f32 %v128, %v128
    %v130 = vsel %vm122, %v129, 0.0
    %131 = vadd.xlane.f32.xlu0 %v130
    %v132 = vpop.xlane.xlu0 %131
    %v133 = vmul.f32 %v132, %v126
    %v134 = vadd.f32 %v133, 1e-05
    %v135 = vrsqrt.pop %v134
    %v136 = vmul.f32 %v128, %v135
    %v137 = vlaneseq
    %v138 = vshrl.u32 %v137, 7
    %v139 = vsub.s32 0, %v138
    %v140 = vrot.slane %v36, %v139
    %v141 = vmul.f32 %v136, %v140
    %v142 = vlaneseq
    %v143 = vshrl.u32 %v142, 7
    %v144 = vsub.s32 0, %v143
    %v145 = vrot.slane %v37, %v144
    %v146 = vadd.f32 %v141, %v145
    %v147 = vtanh.pop %v146
    %v148 = vld [vmem:[%s2] sm:$0xff]
    %v149 = vld [vmem:[%s2 + $0x8] sm:$0xff]
    %v150 = vld [vmem:[%s2 + $0x10] sm:$0xff]
    %v151 = vld [vmem:[%s2 + $0x18] sm:$0xff]
    %v152 = vlaneseq
    %v153 = vshrl.u32 %v152, 7
    %v154 = vsub.s32 0, %v153
    %v155 = vrot.slane %v38, %v154
    %v157 = vsel %vm122, %v147, 0
    %159 = vmatprep.subr.mxu0 0.0
    %160 = vmatpush1.msra.mxu0 %v148
    %161 = vmatprep.subr.mxu0 0.0
    %162 = vmatpush1.msra.mxu0 %v149
    %163 = vmatprep.subr.mxu0 0.0
    %164 = vmatpush1.msra.mxu0 %v150
    %165 = vmatprep.subr.mxu0 0.0
    %166 = vmatpush1.msra.mxu0 %v151
    %167 = vmatprep.subr.mxu0 0.0
    %168 = vmatpush1.msra.mxu0 0.0
    %169 = vmatprep.subr.mxu0 0.0
    %170 = vmatpush1.msra.mxu0 0.0
    %171 = vmatprep.subr.mxu0 0.0
    %172 = vmatpush1.msra.mxu0 0.0
    %173 = vmatprep.subr.mxu0 0.0
    %174 = vmatpush1.msra.mxu0 0.0
    %175 = vmatprep.subr.mxu0 0.0
    %176 = vmatpush1.msra.mxu0 0.0
    %177 = vmatprep.subr.mxu0 0.0
    %178 = vmatpush1.msra.mxu0 0.0
    %179 = vmatprep.subr.mxu0 0.0
    %180 = vmatpush1.msra.mxu0 0.0
    %181 = vmatprep.subr.mxu0 0.0
    %182 = vmatpush1.msra.mxu0 0.0
    %183 = vmatprep.subr.mxu0 0.0
    %184 = vmatpush1.msra.mxu0 0.0
    %185 = vmatprep.subr.mxu0 0.0
    %186 = vmatpush1.msra.mxu0 0.0
    %187 = vmatprep.subr.mxu0 0.0
    %188 = vmatpush1.msra.mxu0 0.0
    %189 = vmatprep.subr.mxu0 0.0
    %190 = vmatpush1.msra.mxu0 0.0
    %191 = vmatprep.subr.mxu0 0.0
    %192 = vmatpush1.msra.mxu0 0.0
    %193 = vmatprep.subr.mxu0 0.0
    %194 = vmatpush1.msra.mxu0 0.0
    %195 = vmatprep.subr.mxu0 0.0
    %196 = vmatpush1.msra.mxu0 0.0
    %197 = vmatprep.subr.mxu0 0.0
    %198 = vmatpush1.msra.mxu0 0.0
    %199 = vmatprep.subr.mxu0 0.0
    %200 = vmatpush1.msra.mxu0 0.0
    %201 = vmatprep.subr.mxu0 0.0
    %202 = vmatpush1.msra.mxu0 0.0
    %203 = vmatprep.subr.mxu0 0.0
    %204 = vmatpush1.msra.mxu0 0.0
    %205 = vmatprep.subr.mxu0 0.0
    %206 = vmatpush1.msra.mxu0 0.0
    %207 = vmatprep.subr.mxu0 0.0
    %208 = vmatpush1.msra.mxu0 0.0
    %209 = vmatprep.subr.mxu0 0.0
    %210 = vmatpush1.msra.mxu0 0.0
    %211 = vmatprep.subr.mxu0 0.0
    %212 = vmatpush1.msra.mxu0 0.0
    %213 = vmatprep.subr.mxu0 0.0
    %214 = vmatpush1.msra.mxu0 0.0
    %215 = vmatprep.subr.mxu0 0.0
    %216 = vmatpush1.msra.mxu0 0.0
    %217 = vmatprep.subr.mxu0 0.0
    %218 = vmatpush1.msra.mxu0 0.0
    %219 = vmatprep.subr.mxu0 0.0
    %220 = vmatpush1.msra.mxu0 0.0
    %221 = vmatprep.subr.mxu0 0.0
    %222 = vmatpush1.msra.mxu0 0.0
    %223 = vmatprep.mubr.f32.mxu0 0.0
    %224 = vmatmul.mubr.f32.gmra.mrb[0].mxu0 %v157
    %v225 = vpop.f32.mrb[0].mxu0
    %v226 = vadd.f32 %v155, %v225
    %v227 = vpop.f32.mrb[0].mxu0
    %228 = vdwg.mxu0
    %v229 = vmax.f32 %v226, 0.0
    %v230 = vld [vmem:[%s3] sm:$0xff]
    %v231 = vld [vmem:[%s3 + $0x8] sm:$0xff]
    %v232 = vld [vmem:[%s3 + $0x10] sm:$0xff]
    %v233 = vld [vmem:[%s3 + $0x18] sm:$0xff]
    %v234 = vlaneseq
    %v235 = vshrl.u32 %v234, 7
    %v236 = vsub.s32 0, %v235
    %v237 = vrot.slane %v39, %v236
    %v239 = vsel %vm122, %v229, 0
    %241 = vmatprep.subr.mxu0 0.0
    %242 = vmatpush1.msra.mxu0 %v230
    %243 = vmatprep.subr.mxu0 0.0
    %244 = vmatpush1.msra.mxu0 %v231
    %245 = vmatprep.subr.mxu0 0.0
    %246 = vmatpush1.msra.mxu0 %v232
    %247 = vmatprep.subr.mxu0 0.0
    %248 = vmatpush1.msra.mxu0 %v233
    %249 = vmatprep.subr.mxu0 0.0
    %250 = vmatpush1.msra.mxu0 0.0
    %251 = vmatprep.subr.mxu0 0.0
    %252 = vmatpush1.msra.mxu0 0.0
    %253 = vmatprep.subr.mxu0 0.0
    %254 = vmatpush1.msra.mxu0 0.0
    %255 = vmatprep.subr.mxu0 0.0
    %256 = vmatpush1.msra.mxu0 0.0
    %257 = vmatprep.subr.mxu0 0.0
    %258 = vmatpush1.msra.mxu0 0.0
    %259 = vmatprep.subr.mxu0 0.0
    %260 = vmatpush1.msra.mxu0 0.0
    %261 = vmatprep.subr.mxu0 0.0
    %262 = vmatpush1.msra.mxu0 0.0
    %263 = vmatprep.subr.mxu0 0.0
    %264 = vmatpush1.msra.mxu0 0.0
    %265 = vmatprep.subr.mxu0 0.0
    %266 = vmatpush1.msra.mxu0 0.0
    %267 = vmatprep.subr.mxu0 0.0
    %268 = vmatpush1.msra.mxu0 0.0
    %269 = vmatprep.subr.mxu0 0.0
    %270 = vmatpush1.msra.mxu0 0.0
    %271 = vmatprep.subr.mxu0 0.0
    %272 = vmatpush1.msra.mxu0 0.0
    %273 = vmatprep.subr.mxu0 0.0
    %274 = vmatpush1.msra.mxu0 0.0
    %275 = vmatprep.subr.mxu0 0.0
    %276 = vmatpush1.msra.mxu0 0.0
    %277 = vmatprep.subr.mxu0 0.0
    %278 = vmatpush1.msra.mxu0 0.0
    %279 = vmatprep.subr.mxu0 0.0
    %280 = vmatpush1.msra.mxu0 0.0
    %281 = vmatprep.subr.mxu0 0.0
    %282 = vmatpush1.msra.mxu0 0.0
    %283 = vmatprep.subr.mxu0 0.0
    %284 = vmatpush1.msra.mxu0 0.0
    %285 = vmatprep.subr.mxu0 0.0
    %286 = vmatpush1.msra.mxu0 0.0
    %287 = vmatprep.subr.mxu0 0.0
    %288 = vmatpush1.msra.mxu0 0.0
    %289 = vmatprep.subr.mxu0 0.0
    %290 = vmatpush1.msra.mxu0 0.0
    %291 = vmatprep.subr.mxu0 0.0
    %292 = vmatpush1.msra.mxu0 0.0
    %293 = vmatprep.subr.mxu0 0.0
    %294 = vmatpush1.msra.mxu0 0.0
    %295 = vmatprep.subr.mxu0 0.0
    %296 = vmatpush1.msra.mxu0 0.0
    %297 = vmatprep.subr.mxu0 0.0
    %298 = vmatpush1.msra.mxu0 0.0
    %299 = vmatprep.subr.mxu0 0.0
    %300 = vmatpush1.msra.mxu0 0.0
    %301 = vmatprep.subr.mxu0 0.0
    %302 = vmatpush1.msra.mxu0 0.0
    %303 = vmatprep.subr.mxu0 0.0
    %304 = vmatpush1.msra.mxu0 0.0
    %305 = vmatprep.mubr.f32.mxu0 0.0
    %306 = vmatmul.mubr.f32.gmra.mrb[0].mxu0 %v239
    %v307 = vpop.f32.mrb[0].mxu0
    %v308 = vadd.f32 %v237, %v307
    %v309 = vpop.f32.mrb[0].mxu0
    %310 = vdwg.mxu0
    %v311 = vtanh.pop %v308
    %vm312 = vcmask 48128
    %313 = vst.msk [vmem:[#allocation5] sm:$0xff] %vm312, %v311
    // Predicated region
    $region26: #{tpu_custom_call.1} parent=1 // pred_check
      _
    $region27: #{tpu_custom_call.1} parent=1 // pred_check_branch
      %315 = sbr.rel (0) target = $region29
    $region28: #{tpu_custom_call.1} parent=1 // pred_region
      %s317 = ssub.s32 128, 128
      %318 = vsyncadd [#allocation4], %s317
      %s320 = sshll.u32 [#allocation5], 4
      %s321 = int_to_ptr.vmem [resolvable:$true] %s320
      %323 = dma.vmem_to_hbm [thread:$0]  %s321, 128, %s5, [#allocation4]
    $region29: #{tpu_custom_call.1} parent=1 // pred_fallthru
      _
    // Predicated region
    $region30: #{tpu_custom_call.1} parent=1 // pred_check
      _
    $region31: #{tpu_custom_call.1} parent=1 // pred_check_branch
      %325 = sbr.rel (0) target = $region33
    $region32: #{tpu_custom_call.1} parent=1 // pred_region
      %326 = dma.done [#allocation4], 128
    $region33: #{tpu_custom_call.1} parent=1 // pred_fallthru
      _
    %327 = vsyncpa [#allocation3], 1
    %328 = vsyncpa [#allocation4], 1

</llo_original>
